<compile_context>
chip_gen: v7x
topology: tpu7x:2x2x1
jax: 0.10.0
libtpu: 0.0.40
codegen_flags: <defaults>
</compile_context>

<pallas_src>
import jax
import jax.numpy as jnp
from jax.experimental import pallas as pl
from jax.experimental.pallas import tpu as pltpu

_EPS = 1e-12  # F.normalize default eps


def _round_up(x, m):
    return ((x + m - 1) // m) * m


def _normed_linear_kernel(x_ref, wn_ref, o_ref):
    # x_ref:  (TM, Fp) f32   — batch tile, pipelined.
    # wn_ref: (Fp, Cp) bf16  — pre-normalized weight, VMEM-resident across grid.
    # o_ref:  (TM, Cp) f32   — lane-dense output tile (unmasked vst).
    x = x_ref[...]

    # Row L2 norm in f32 (VPU mul + XLU reduce), eps clamp as in F.normalize.
    row_norm = jnp.sqrt(jnp.sum(x * x, axis=-1, keepdims=True))           # (TM, 1)
    row_scale = pl.reciprocal(jnp.maximum(row_norm, _EPS), approx=True)    # EUP slot

    # bf16 MXU matmul with f32 accumulation; weight columns are already unit-norm.
    s = jnp.dot(x.astype(wn_ref.dtype), wn_ref[...],
                preferred_element_type=jnp.float32)                        # (TM, Cp)

    # Epilogue: scale the small (TM, Cp) tile instead of the (TM, Fp) input.
    o_ref[...] = (s * row_scale).astype(o_ref.dtype)


def prepare_normed_linear_weight(weight, *, matmul_dtype=jnp.bfloat16):
    """Column-normalize (F.normalize(W, dim=0)) and pad the (F, C) weight ONCE.

    Call at init / whenever the parameter changes; reuse the result for every
    forward.  Zero-padding is exact: padded rows/columns contribute 0 logits.
    """
    F, C = weight.shape
    Fp = _round_up(F, 128)
    Cp = _round_up(C, 128)
    w32 = weight.astype(jnp.float32)
    col_norm = jnp.sqrt(jnp.sum(w32 * w32, axis=0, keepdims=True))
    wn = w32 * (1.0 / jnp.maximum(col_norm, _EPS))
    return jnp.pad(wn, ((0, Fp - F), (0, Cp - C))).astype(matmul_dtype)


def normed_linear_forward(x, wn_padded, out_features, *, tm=256):
    """x: (B, F) float; wn_padded: output of prepare_normed_linear_weight.

    Returns (B, out_features) cosine logits, matching the PyTorch module.
    """
    B, F = x.shape
    Fp, Cp = wn_padded.shape
    assert F <= Fp and out_features <= Cp, "weight was prepared for other dims"

    # Sublane multiple 16 so the bf16 operands stay packed-layout friendly.
    SUB = 16
    Bp = _round_up(B, SUB)
    TM = min(_round_up(tm, SUB), Bp)
    Bp = _round_up(Bp, TM)

    xp = jnp.pad(x.astype(jnp.float32), ((0, Bp - B), (0, Fp - F)))

    out = pl.pallas_call(
        _normed_linear_kernel,
        out_shape=jax.ShapeDtypeStruct((Bp, Cp), jnp.float32),
        grid_spec=pltpu.PrefetchScalarGridSpec(
            num_scalar_prefetch=0,
            grid=(Bp // TM,),
            in_specs=[
                pl.BlockSpec((TM, Fp), lambda i: (i, 0)),   # batch-tiled, pipelined
                pl.BlockSpec((Fp, Cp), lambda i: (0, 0)),   # constant idx -> resident
            ],
            out_specs=pl.BlockSpec((TM, Cp), lambda i: (i, 0)),  # lane-dense
        ),
        compiler_params=pltpu.CompilerParams(
            dimension_semantics=("parallel",),              # megacore-shardable (v7x)
        ),
    )(xp, wn_padded)

    return out[:B, :out_features].astype(x.dtype)


def init_normed_linear_params(key, in_features, out_features):
    """Mirrors: weight.uniform_(-1, 1).renorm_(2, 1, 1e-5).mul_(1e5)
    -> each column of the (in_features, out_features) weight ends up unit-norm
       (columns whose norm was already <= 1e-5 are only scaled by 1e5)."""
    w = jax.random.uniform(
        key, (in_features, out_features), minval=-1.0, maxval=1.0, dtype=jnp.float32
    )
    col_norm = jnp.sqrt(jnp.sum(w * w, axis=0, keepdims=True))
    scale = jnp.where(col_norm > 1e-5, 1e-5 / col_norm, 1.0) * 1e5
    return w * scale


if __name__ == "__main__":
    key = jax.random.PRNGKey(0)
    k_w, k_x = jax.random.split(key)

    batch = 4
    in_features = 32
    out_features = 10

    weight = init_normed_linear_params(k_w, in_features, out_features)
    x = jax.random.normal(k_x, (batch, in_features), dtype=jnp.float32)

    # Pad + column-normalize the weight ONCE (init time); reuse every forward.
    wn_padded = prepare_normed_linear_weight(weight)

    out = normed_linear_forward(x, wn_padded, out_features)
    out = jax.block_until_ready(out)

    # Reference (same math as the PyTorch module, all in f32).
    xn_ref = x / jnp.maximum(
        jnp.sqrt(jnp.sum(x * x, axis=1, keepdims=True)), _EPS
    )
    wn_ref = weight / jnp.maximum(
        jnp.sqrt(jnp.sum(weight * weight, axis=0, keepdims=True)), _EPS
    )
    ref = xn_ref @ wn_ref

    assert out.shape == (batch, out_features)
    # bf16 MXU operands + approx EUP reciprocal -> looser tolerance than pure f32.
    assert jnp.allclose(out, ref, atol=2e-2, rtol=2e-2), "mismatch vs reference"

    print("KERNEL_OK")
</pallas_src>

<mosaic_0001>
module attributes {stable_mosaic.version = 11 : i64} {
  func.func @_normed_linear_kernel(%arg0: i32, %arg1: memref<16x128xf32, #tpu.memory_space<vmem>>, %arg2: memref<128x128xbf16, #tpu.memory_space<vmem>>, %arg3: memref<16x128xf32, #tpu.memory_space<vmem>>) attributes {dimension_semantics = [#tpu.dimension_semantics<parallel>], iteration_bounds = array<i64: 1>, scalar_prefetch = 0 : i64, scratch_operands = 0 : i64, tpu.core_type = #tpu.core_type<tc>, window_params = [{transform_indices = @transform_0, window_bounds = array<i64: 16, 128>}, {pipeline_mode = #tpu.pipeline_mode<synchronous>, transform_indices = @transform_1, window_bounds = array<i64: 128, 128>}, {transform_indices = @transform_2, window_bounds = array<i64: 16, 128>}]} {
    %c0 = arith.constant 0 : index
    %c0_0 = arith.constant 0 : index
    %0 = vector.load %arg1[%c0, %c0_0] : memref<16x128xf32, #tpu.memory_space<vmem>>, vector<16x128xf32>
    %1 = arith.mulf %0, %0 : vector<16x128xf32>
    %cst = arith.constant dense<0.000000e+00> : vector<16xf32>
    %2 = vector.multi_reduction <add>, %1, %cst [1] : vector<16x128xf32> to vector<16xf32>
    %3 = vector.shape_cast %2 : vector<16xf32> to vector<16x1xf32>
    %4 = math.sqrt %3 : vector<16x1xf32>
    %cst_1 = arith.constant 9.99999996E-13 : f32
    %5 = vector.broadcast %cst_1 : f32 to vector<16x1xf32>
    %6 = arith.maximumf %4, %5 : vector<16x1xf32>
    %7 = tpu.reciprocal %6 {approx = true} : vector<16x1xf32> -> vector<16x1xf32>
    %8 = arith.truncf %0 : vector<16x128xf32> to vector<16x128xbf16>
    %c0_2 = arith.constant 0 : index
    %c0_3 = arith.constant 0 : index
    %9 = vector.load %arg2[%c0_2, %c0_3] : memref<128x128xbf16, #tpu.memory_space<vmem>>, vector<128x128xbf16>
    %cst_4 = arith.constant dense<0.000000e+00> : vector<16x128xf32>
    %10 = tpu.matmul %8, %9, %cst_4 {dimension_numbers = #tpu.dot_dimension_numbers<[1], [0], [0], [1], [0, 0, 1, 1], [], []>} : vector<16x128xbf16>, vector<128x128xbf16>, vector<16x128xf32> -> vector<16x128xf32>
    %11 = vector.broadcast %7 : vector<16x1xf32> to vector<16x128xf32>
    %12 = arith.mulf %10, %11 : vector<16x128xf32>
    %c0_5 = arith.constant 0 : index
    %c0_6 = arith.constant 0 : index
    %13 = vector.load %arg3[%c0_5, %c0_6] : memref<16x128xf32, #tpu.memory_space<vmem>>, vector<16x128xf32>
    tpu.vector_store %arg3[%c0_5, %c0_6], %12 {strides = array<i32>} : memref<16x128xf32, #tpu.memory_space<vmem>>, vector<16x128xf32>,
    return
  }
  func.func @transform_0(%arg0: i32) -> (i32, i32) {
    %c0_i32 = arith.constant 0 : i32
    %c0_i32_0 = arith.constant 0 : i32
    return %arg0, %c0_i32 : i32, i32
  }
  func.func @transform_1(%arg0: i32) -> (i32, i32) {
    %c0_i32 = arith.constant 0 : i32
    %c0_i32_0 = arith.constant 0 : i32
    %c0_i32_1 = arith.constant 0 : i32
    return %c0_i32, %c0_i32_0 : i32, i32
  }
  func.func @transform_2(%arg0: i32) -> (i32, i32) {
    %c0_i32 = arith.constant 0 : i32
    %c0_i32_0 = arith.constant 0 : i32
    return %arg0, %c0_i32 : i32, i32
  }
}

</mosaic_0001>

<llo_original>
// kernel: tpu_custom_call.1
$region0: #{tpu_custom_call.1}
  #allocation0 [shape = 'u32[]', space=smem, size = 0x4, offset = 0x4, fixed_abs, tag = 'smem constant byte address 0x4 - core index']
  #allocation1 [shape = 'u32[144,128]{1,0:T(1,128)}', space=vmem, size = 0x12000, scoped, tag = 'internal scratch']
  %s0 = inlined_call_operand.hbm [shape: f32[16,128], index: 0, kind: input, shape index: {}]
  %s1 = inlined_call_operand.hbm [shape: bf16[128,128], index: 1, kind: input, shape index: {}]
  %s2 = inlined_call_operand.hbm [shape: f32[16,128], index: 2, kind: output, shape index: {}]
  %s3 = sld [smem:[#allocation0]]
  $region26: #{tpu_custom_call.1} parent=0
    _
  %s5 = ssub.s32 1, %s3
  %s6 = scalar_select 0, %s5, %s3
  $region1: #{tpu_custom_call.1} parent=0
    #allocation2 [shape = 'u8[8192]{0}', space=vmem, size = 0x2000, scoped, tag = 'input window, operand 0, single buffered']
    #allocation3 [shape = 's32[1]{0}', space=sflag, size = 0x4, scoped, tag = 'scoped memory for tpu_custom_call.1']
    #allocation4 [shape = 's32[1]{0}', space=sflag, size = 0x4, scoped, tag = 'scoped memory for tpu_custom_call.1']
    #allocation5 [shape = 'u8[32768]{0}', space=vmem, size = 0x8000, scoped, tag = 'input window, operand 1, single buffered']
    #allocation6 [shape = 's32[1]{0}', space=sflag, size = 0x4, scoped, tag = 'scoped memory for tpu_custom_call.1']
    #allocation7 [shape = 'u8[8192]{0}', space=vmem, size = 0x2000, scoped, tag = 'output window, operand 0, single buffered']
    %7 = vsyncpa [#allocation3], 0
    %8 = vsyncpa [#allocation6], 0
    %9 = vsyncpa [#allocation4], 0
    // Predicated region
    $region2: #{tpu_custom_call.1} parent=1 // pred_check
      _
    $region3: #{tpu_custom_call.1} parent=1 // pred_check_branch
      %11 = sbr.rel (0) target = $region5
    $region4: #{tpu_custom_call.1} parent=1 // pred_region
      %s13 = ssub.s32 256, 256
      %14 = vsyncadd [#allocation3], %s13
      %s15 = sshll.u32 [#allocation2], 4
      %s16 = int_to_ptr.vmem [resolvable:$true] %s15
      %21 = dma.hbm_to_vmem [thread:$0]  %s0, 256, %s16, [#allocation3], 128, 128, 8
    $region5: #{tpu_custom_call.1} parent=1 // pred_fallthru
      _
    // Predicated region
    $region6: #{tpu_custom_call.1} parent=1 // pred_check
      _
    $region7: #{tpu_custom_call.1} parent=1 // pred_check_branch
      %23 = sbr.rel (0) target = $region9
    $region8: #{tpu_custom_call.1} parent=1 // pred_region
      %s25 = ssub.s32 1024, 1024
      %26 = vsyncadd [#allocation6], %s25
      %s27 = sshll.u32 [#allocation5], 4
      %s28 = int_to_ptr.vmem [resolvable:$true] %s27
      %33 = dma.hbm_to_vmem [thread:$0]  %s1, 1024, %s28, [#allocation6], 64, 64, 4
    $region9: #{tpu_custom_call.1} parent=1 // pred_fallthru
      _
    // Predicated region
    $region10: #{tpu_custom_call.1} parent=1 // pred_check
      _
    $region11: #{tpu_custom_call.1} parent=1 // pred_check_branch
      %35 = sbr.rel (0) target = $region13
    $region12: #{tpu_custom_call.1} parent=1 // pred_region
      %36 = dma.done [#allocation3], 256
    $region13: #{tpu_custom_call.1} parent=1 // pred_fallthru
      _
    // Predicated region
    $region14: #{tpu_custom_call.1} parent=1 // pred_check
      _
    $region15: #{tpu_custom_call.1} parent=1 // pred_check_branch
      %38 = sbr.rel (0) target = $region17
    $region16: #{tpu_custom_call.1} parent=1 // pred_region
      %39 = dma.done [#allocation6], 1024
    $region17: #{tpu_custom_call.1} parent=1 // pred_fallthru
      _
    %v41 = vld [vmem:[#allocation2] sm:$0xff]
    %v42 = vld [vmem:[#allocation2 + $0x8] sm:$0xff]
    %v43 = vmul.f32 %v41, %v41
    %v44 = vmul.f32 %v42, %v42
    %45 = vadd.xlane.f32.xlu0 %v43
    %v46 = vpop.xlane.xlu0 %45
    %47 = vadd.xlane.f32.xlu0 %v44
    %v48 = vpop.xlane.xlu0 %47
    %v49 = vrsqrt.pop %v46
    %v50 = vmul.f32 %v46, %v49
    %vm51 = vcmp.eq.f32.partialorder %v46, inf
    %v52 = vsel %vm51, %v46, %v50
    %vm53 = vcmp.eq.f32.partialorder %v46, 0.0
    %v54 = vand.u32 %v46, 2147483648
    %v55 = vsel %vm53, %v54, %v52
    %v56 = vrsqrt.pop %v48
    %v57 = vmul.f32 %v48, %v56
    %vm58 = vcmp.eq.f32.partialorder %v48, inf
    %v59 = vsel %vm58, %v48, %v57
    %vm60 = vcmp.eq.f32.partialorder %v48, 0.0
    %v61 = vand.u32 %v48, 2147483648
    %v62 = vsel %vm60, %v61, %v59
    %v63 = vmax.f32 %v55, 1e-12
    %v64 = vmax.f32 %v62, 1e-12
    %v65 = vrcp.pop %v63
    %v66 = vrcp.pop %v64
    %v67 = vpack.c.bf16 %v42, %v41
    %v68 = vld [vmem:[#allocation5] sm:$0xf]
    %v69 = vld [vmem:[#allocation5 + $0x4] sm:$0xf]
    %v70 = vld [vmem:[#allocation5 + $0x8] sm:$0xf]
    %v71 = vld [vmem:[#allocation5 + $0xc] sm:$0xf]
    %v72 = vld [vmem:[#allocation5 + $0x10] sm:$0xf]
    %v73 = vld [vmem:[#allocation5 + $0x14] sm:$0xf]
    %v74 = vld [vmem:[#allocation5 + $0x18] sm:$0xf]
    %v75 = vld [vmem:[#allocation5 + $0x1c] sm:$0xf]
    %v76 = vld [vmem:[#allocation5 + $0x20] sm:$0xf]
    %v77 = vld [vmem:[#allocation5 + $0x24] sm:$0xf]
    %v78 = vld [vmem:[#allocation5 + $0x28] sm:$0xf]
    %v79 = vld [vmem:[#allocation5 + $0x2c] sm:$0xf]
    %v80 = vld [vmem:[#allocation5 + $0x30] sm:$0xf]
    %v81 = vld [vmem:[#allocation5 + $0x34] sm:$0xf]
    %v82 = vld [vmem:[#allocation5 + $0x38] sm:$0xf]
    %v83 = vld [vmem:[#allocation5 + $0x3c] sm:$0xf]
    %v100 = vunpack.c.l.b16 %v68
    %v101 = vunpack.c.l.b16 %v69
    %v102 = vunpack.c.l.b16 %v70
    %v103 = vunpack.c.l.b16 %v71
    %v104 = vunpack.c.l.b16 %v72
    %v105 = vunpack.c.l.b16 %v73
    %v106 = vunpack.c.l.b16 %v74
    %v107 = vunpack.c.l.b16 %v75
    %v108 = vunpack.c.l.b16 %v76
    %v109 = vunpack.c.l.b16 %v77
    %v110 = vunpack.c.l.b16 %v78
    %v111 = vunpack.c.l.b16 %v79
    %v112 = vunpack.c.l.b16 %v80
    %v113 = vunpack.c.l.b16 %v81
    %v114 = vunpack.c.l.b16 %v82
    %v115 = vunpack.c.l.b16 %v83
    %v116 = vpack.c.b16 %v101, %v100
    %v117 = vpack.c.b16 %v103, %v102
    %v118 = vpack.c.b16 %v105, %v104
    %v119 = vpack.c.b16 %v107, %v106
    %v120 = vpack.c.b16 %v109, %v108
    %v121 = vpack.c.b16 %v111, %v110
    %v122 = vpack.c.b16 %v113, %v112
    %v123 = vpack.c.b16 %v115, %v114
    %132 = vmatprep.subr.bf16.mxu0 0
    %133 = vmatpush1.bf16.msra.mxu0 %v116
    %134 = vmatprep.subr.bf16.mxu0 0
    %135 = vmatpush1.bf16.msra.mxu0 %v117
    %136 = vmatprep.subr.bf16.mxu0 0
    %137 = vmatpush1.bf16.msra.mxu0 %v118
    %138 = vmatprep.subr.bf16.mxu0 0
    %139 = vmatpush1.bf16.msra.mxu0 %v119
    %140 = vmatprep.subr.bf16.mxu0 0
    %141 = vmatpush1.bf16.msra.mxu0 %v120
    %142 = vmatprep.subr.bf16.mxu0 0
    %143 = vmatpush1.bf16.msra.mxu0 %v121
    %144 = vmatprep.subr.bf16.mxu0 0
    %145 = vmatpush1.bf16.msra.mxu0 %v122
    %146 = vmatprep.subr.bf16.mxu0 0
    %147 = vmatpush1.bf16.msra.mxu0 %v123
    %148 = vmatprep.subr.bf16.mxu0 0
    %149 = vmatpush1.bf16.msra.mxu0 0
    %150 = vmatprep.subr.bf16.mxu0 0
    %151 = vmatpush1.bf16.msra.mxu0 0
    %152 = vmatprep.subr.bf16.mxu0 0
    %153 = vmatpush1.bf16.msra.mxu0 0
    %154 = vmatprep.subr.bf16.mxu0 0
    %155 = vmatpush1.bf16.msra.mxu0 0
    %156 = vmatprep.subr.bf16.mxu0 0
    %157 = vmatpush1.bf16.msra.mxu0 0
    %158 = vmatprep.subr.bf16.mxu0 0
    %159 = vmatpush1.bf16.msra.mxu0 0
    %160 = vmatprep.subr.bf16.mxu0 0
    %161 = vmatpush1.bf16.msra.mxu0 0
    %162 = vmatprep.subr.bf16.mxu0 0
    %163 = vmatpush1.bf16.msra.mxu0 0
    %164 = vmatprep.mubr.bf16.mxu0 0
    %165 = vmatmul.mubr.bf16.gmra.mrb[0].mxu0 %v67
    %v166 = vpop.f32.mrb[0].mxu0
    %v167 = vadd.f32 0.0, %v166
    %v168 = vpop.f32.mrb[0].mxu0
    %v169 = vpop.f32.mrb[0].mxu0
    %v170 = vadd.f32 0.0, %v169
    %v171 = vpop.f32.mrb[0].mxu0
    %172 = vdwg.mxu0
    %v173 = vmul.f32 %v167, %v65
    %v174 = vmul.f32 %v170, %v66
    %175 = vst [vmem:[#allocation7] sm:$0xff] %v173
    %176 = vst [vmem:[#allocation7 + $0x8] sm:$0xff] %v174
    // Predicated region
    $region18: #{tpu_custom_call.1} parent=1 // pred_check
      _
    $region19: #{tpu_custom_call.1} parent=1 // pred_check_branch
      %178 = sbr.rel (0) target = $region21
    $region20: #{tpu_custom_call.1} parent=1 // pred_region
      %s180 = ssub.s32 256, 256
      %181 = vsyncadd [#allocation4], %s180
      %s182 = sshll.u32 [#allocation7], 4
      %s183 = int_to_ptr.vmem [resolvable:$true] %s182
      %188 = dma.vmem_to_hbm [thread:$0]  %s183, 256, %s2, [#allocation4], 128, 128, 8
    $region21: #{tpu_custom_call.1} parent=1 // pred_fallthru
      _
    // Predicated region
    $region22: #{tpu_custom_call.1} parent=1 // pred_check
      _
    $region23: #{tpu_custom_call.1} parent=1 // pred_check_branch
      %190 = sbr.rel (0) target = $region25
    $region24: #{tpu_custom_call.1} parent=1 // pred_region
      %191 = dma.done [#allocation4], 256
    $region25: #{tpu_custom_call.1} parent=1 // pred_fallthru
      _
    %192 = vsyncpa [#allocation3], 1
    %193 = vsyncpa [#allocation6], 1
    %194 = vsyncpa [#allocation4], 1

</llo_original>
